<compile_context>
chip_gen: v5e
topology: v5e:2x2
jax: 0.10.0
libtpu: 0.0.40
codegen_flags: <defaults>
</compile_context>

<pallas_src>
import functools

import numpy as np
import jax
import jax.numpy as jnp
from jax import lax
from jax.experimental import pallas as pl
from jax.experimental.pallas import tpu as pltpu

# packed-parameter slab layout (all static offsets, 8-row aligned)
_SLAB_R, _SLAB_C = 112, 96
_CD_ROW, _BIAS_COL = 96, 88
_STRIDE, _PAD = 2, 1


def _fused_kernel(x_ref, w_ref, o_ref, *, R, CH, W, Wo, CD_ROW, BIAS_COL):
    """Fused conv(k2,s2,p1)+bias, relu, 1x1 conv+bias, residual add, -1.6.

    x_ref : (Cin*H, W)    input image viewed as a 2-D matrix
    w_ref : (3, 112, 96)  packed constant operands (see _prepare_params)
    o_ref : (R, Wo) = (Cout*Ho, Wo)   output in NCHW-compatible layout
    """
    xv = x_ref[...]                                             # (CH, W)

    # stride-2 column selection (+ W zero-padding), folded into constant mats
    c0 = w_ref[0, CD_ROW:CD_ROW + W, :Wo]                       # (W, Wo)
    c1 = w_ref[1, CD_ROW:CD_ROW + W, :Wo]
    y0 = jnp.dot(xv, c0, preferred_element_type=jnp.float32)    # (CH, Wo)
    y1 = jnp.dot(xv, c1, preferred_element_type=jnp.float32)

    # stride-2 row selection + H padding + channel sum + conv weights + bias1
    l0 = w_ref[0, :R, :CH]                                      # (R, CH)
    l1 = w_ref[1, :R, :CH]
    b1 = w_ref[0, :R, BIAS_COL:BIAS_COL + 1]                    # (R, 1)
    v1 = (jnp.dot(l0, y0, preferred_element_type=jnp.float32)
          + jnp.dot(l1, y1, preferred_element_type=jnp.float32)
          + b1)                                                 # (R, Wo)

    v2 = jnp.maximum(v1, 0.0)                                   # relu

    # 1x1 conv as (W2 kron I_Ho); (bias2 - 1.6) pre-folded into bo
    w2k = w_ref[2, :R, :R]                                      # (R, R)
    bo = w_ref[2, :R, BIAS_COL:BIAS_COL + 1]                    # (R, 1)
    o_ref[...] = v1 + jnp.dot(w2k, v2, preferred_element_type=jnp.float32) + bo


def _prepare_params(w_conv, b_conv, w_conv1, b_conv1, H, W):
    """One-time host-side packing of every constant kernel operand."""
    w1 = np.asarray(w_conv, np.float32)                 # (O1, Cin, kh, kw)
    b1 = np.asarray(b_conv, np.float32)                 # (O1,)
    O1, Cin, kh, kw = w1.shape
    w2 = np.asarray(w_conv1, np.float32).reshape(w_conv1.shape[0], O1)
    b2 = np.asarray(b_conv1, np.float32)
    O2 = w2.shape[0]
    s, p = _STRIDE, _PAD
    Ho = (H + 2 * p - kh) // s + 1
    Wo = (W + 2 * p - kw) // s + 1
    R, CH = O1 * Ho, Cin * H

    assert O2 == O1, "residual add requires matching channel counts"
    assert R <= _BIAS_COL and CH <= _BIAS_COL       # no overlap with bias col
    assert R <= _CD_ROW and _CD_ROW + W <= _SLAB_R  # Cd rows fit, 8-aligned
    assert max(R, CH, Wo) <= _SLAB_C

    # column selectors: C_dx[w, j] = 1 iff w == s*j + dx - p (in range)
    cd = np.zeros((kw, W, Wo), np.float32)
    for dx in range(kw):
        for j in range(Wo):
            w_idx = s * j + dx - p
            if 0 <= w_idx < W:
                cd[dx, w_idx, j] = 1.0

    # L_dx[(o,i), (c,h)] = sum_dy w1[o,c,dy,dx] * [h == s*i + dy - p]
    L = np.zeros((kw, R, CH), np.float32)
    for dx in range(kw):
        for dy in range(kh):
            for i in range(Ho):
                h_idx = s * i + dy - p
                if 0 <= h_idx < H:
                    for o in range(O1):
                        for c in range(Cin):
                            L[dx, o * Ho + i, c * H + h_idx] += w1[o, c, dy, dx]

    w2k = np.kron(w2, np.eye(Ho, dtype=np.float32))     # (O2*Ho, O1*Ho)
    b1rep = np.repeat(b1, Ho)                           # (O1*Ho,)
    borep = np.repeat(b2 - 1.6, Ho)                     # (O2*Ho,), bias2-1.6

    wpack = np.zeros((3, _SLAB_R, _SLAB_C), np.float32)
    wpack[0, :R, :CH] = L[0]
    wpack[1, :R, :CH] = L[1]
    wpack[2, :R, :R] = w2k
    wpack[0, :R, _BIAS_COL] = b1rep
    wpack[2, :R, _BIAS_COL] = borep
    wpack[0, _CD_ROW:_CD_ROW + W, :Wo] = cd[0]
    wpack[1, _CD_ROW:_CD_ROW + W, :Wo] = cd[1]
    return jnp.asarray(wpack), (O2, Ho, Wo, R, CH)


def make_forward(w_conv, b_conv, w_conv1, b_conv1, input_hw):
    H, W = input_hw
    wpack, (O2, Ho, Wo, R, CH) = _prepare_params(
        w_conv, b_conv, w_conv1, b_conv1, H, W)

    kernel = functools.partial(_fused_kernel, R=R, CH=CH, W=W, Wo=Wo,
                               CD_ROW=_CD_ROW, BIAS_COL=_BIAS_COL)
    vmem = pl.BlockSpec(memory_space=pltpu.MemorySpace.VMEM)
    call = pl.pallas_call(
        kernel,
        out_shape=jax.ShapeDtypeStruct((R, Wo), jnp.float32),
        in_specs=[vmem, vmem],
        out_specs=vmem,
    )

    def forward(x):
        N, Cin, H_, W_ = x.shape
        assert (H_, W_) == (H, W)
        # TODO(synk): N > 1 uses a per-sample loop; fold batch into the pixel
        # dimension with a "parallel" grid if this ever runs at real sizes.
        outs = [call(x[n].reshape(Cin * H, W), wpack).reshape(O2, Ho, Wo)
                for n in range(N)]
        if N == 1:
            return outs[0][None]      # pure metadata reshape to NCHW
        return jnp.stack(outs, axis=0)

    return forward


if __name__ == "__main__":
    key = jax.random.PRNGKey(0)
    k_x, k_w1, k_b1, k_w2, k_b2 = jax.random.split(key, 5)

    # input matching the reference module: (1, 3, 10, 12)
    x = jax.random.normal(k_x, (1, 3, 10, 12), dtype=jnp.float32)

    w_conv = 0.1 * jax.random.normal(k_w1, (14, 3, 2, 2), dtype=jnp.float32)
    b_conv = 0.1 * jax.random.normal(k_b1, (14,), dtype=jnp.float32)
    # TODO(synk): module's conv1 has out_channels=12 which makes v1+v3 an
    # invalid broadcast in PyTorch; out_channels is 14 here so the residual
    # add is well-defined.
    w_conv1 = 0.1 * jax.random.normal(k_w2, (14, 14, 1, 1), dtype=jnp.float32)
    b_conv1 = 0.1 * jax.random.normal(k_b2, (14,), dtype=jnp.float32)

    forward = make_forward(w_conv, b_conv, w_conv1, b_conv1, input_hw=(10, 12))
    out = jax.jit(forward)(x)
    jax.block_until_ready(out)

    # pure-JAX reference of the same computation
    v1 = lax.conv_general_dilated(
        x, w_conv, window_strides=(2, 2), padding=((1, 1), (1, 1)),
        dimension_numbers=("NCHW", "OIHW", "NCHW")) + b_conv[None, :, None, None]
    v2 = jnp.maximum(v1, 0.0)
    v3 = lax.conv_general_dilated(
        v2, w_conv1, window_strides=(1, 1), padding=((0, 0), (0, 0)),
        dimension_numbers=("NCHW", "OIHW", "NCHW")) + b_conv1[None, :, None, None]
    ref = v1 + v3 - 1.6

    assert out.shape == (1, 14, 6, 7), out.shape
    err = float(jnp.max(jnp.abs(out - ref)))
    assert err < 5e-3, err
    print("KERNEL_OK")
</pallas_src>

<mosaic_0001>
module attributes {stable_mosaic.version = 11 : i64} {
  func.func @_fused_kernel(%arg0: memref<30x12xf32, #tpu.memory_space<vmem>>, %arg1: memref<3x112x96xf32, #tpu.memory_space<vmem>>, %arg2: memref<84x7xf32, #tpu.memory_space<vmem>>) attributes {dimension_semantics = [], scalar_prefetch = 0 : i64, scratch_operands = 0 : i64, tpu.core_type = #tpu.core_type<tc>} {
    %c0 = arith.constant 0 : index
    %c0_0 = arith.constant 0 : index
    %0 = vector.load %arg0[%c0, %c0_0] : memref<30x12xf32, #tpu.memory_space<vmem>>, vector<30x12xf32>
    %c0_1 = arith.constant 0 : index
    %c96 = arith.constant 96 : index
    %c0_2 = arith.constant 0 : index
    %1 = vector.load %arg1[%c0_1, %c96, %c0_2] : memref<3x112x96xf32, #tpu.memory_space<vmem>>, vector<1x12x7xf32>
    %2 = vector.shape_cast %1 : vector<1x12x7xf32> to vector<12x7xf32>
    %c1 = arith.constant 1 : index
    %c96_3 = arith.constant 96 : index
    %c0_4 = arith.constant 0 : index
    %3 = vector.load %arg1[%c1, %c96_3, %c0_4] : memref<3x112x96xf32, #tpu.memory_space<vmem>>, vector<1x12x7xf32>
    %4 = vector.shape_cast %3 : vector<1x12x7xf32> to vector<12x7xf32>
    %cst = arith.constant dense<0.000000e+00> : vector<30x7xf32>
    %5 = tpu.matmul %0, %2, %cst {dimension_numbers = #tpu.dot_dimension_numbers<[1], [0], [0], [1], [0, 0, 1, 1], [], []>} : vector<30x12xf32>, vector<12x7xf32>, vector<30x7xf32> -> vector<30x7xf32>
    %cst_5 = arith.constant dense<0.000000e+00> : vector<30x7xf32>
    %6 = tpu.matmul %0, %4, %cst_5 {dimension_numbers = #tpu.dot_dimension_numbers<[1], [0], [0], [1], [0, 0, 1, 1], [], []>} : vector<30x12xf32>, vector<12x7xf32>, vector<30x7xf32> -> vector<30x7xf32>
    %c0_6 = arith.constant 0 : index
    %c0_7 = arith.constant 0 : index
    %c0_8 = arith.constant 0 : index
    %7 = vector.load %arg1[%c0_6, %c0_7, %c0_8] : memref<3x112x96xf32, #tpu.memory_space<vmem>>, vector<1x84x30xf32>
    %8 = vector.shape_cast %7 : vector<1x84x30xf32> to vector<84x30xf32>
    %c1_9 = arith.constant 1 : index
    %c0_10 = arith.constant 0 : index
    %c0_11 = arith.constant 0 : index
    %9 = vector.load %arg1[%c1_9, %c0_10, %c0_11] : memref<3x112x96xf32, #tpu.memory_space<vmem>>, vector<1x84x30xf32>
    %10 = vector.shape_cast %9 : vector<1x84x30xf32> to vector<84x30xf32>
    %c0_12 = arith.constant 0 : index
    %c0_13 = arith.constant 0 : index
    %c88 = arith.constant 88 : index
    %11 = vector.load %arg1[%c0_12, %c0_13, %c88] : memref<3x112x96xf32, #tpu.memory_space<vmem>>, vector<1x84x1xf32>
    %12 = vector.shape_cast %11 : vector<1x84x1xf32> to vector<84x1xf32>
    %cst_14 = arith.constant dense<0.000000e+00> : vector<84x7xf32>
    %13 = tpu.matmul %8, %5, %cst_14 {dimension_numbers = #tpu.dot_dimension_numbers<[1], [0], [0], [1], [0, 0, 1, 1], [], []>} : vector<84x30xf32>, vector<30x7xf32>, vector<84x7xf32> -> vector<84x7xf32>
    %cst_15 = arith.constant dense<0.000000e+00> : vector<84x7xf32>
    %14 = tpu.matmul %10, %6, %cst_15 {dimension_numbers = #tpu.dot_dimension_numbers<[1], [0], [0], [1], [0, 0, 1, 1], [], []>} : vector<84x30xf32>, vector<30x7xf32>, vector<84x7xf32> -> vector<84x7xf32>
    %15 = arith.addf %13, %14 : vector<84x7xf32>
    %16 = vector.broadcast %12 : vector<84x1xf32> to vector<84x7xf32>
    %17 = arith.addf %15, %16 : vector<84x7xf32>
    %cst_16 = arith.constant 0.000000e+00 : f32
    %18 = vector.broadcast %cst_16 : f32 to vector<84x7xf32>
    %19 = arith.maximumf %17, %18 : vector<84x7xf32>
    %c2 = arith.constant 2 : index
    %c0_17 = arith.constant 0 : index
    %c0_18 = arith.constant 0 : index
    %20 = vector.load %arg1[%c2, %c0_17, %c0_18] : memref<3x112x96xf32, #tpu.memory_space<vmem>>, vector<1x84x84xf32>
    %21 = vector.shape_cast %20 : vector<1x84x84xf32> to vector<84x84xf32>
    %c2_19 = arith.constant 2 : index
    %c0_20 = arith.constant 0 : index
    %c88_21 = arith.constant 88 : index
    %22 = vector.load %arg1[%c2_19, %c0_20, %c88_21] : memref<3x112x96xf32, #tpu.memory_space<vmem>>, vector<1x84x1xf32>
    %23 = vector.shape_cast %22 : vector<1x84x1xf32> to vector<84x1xf32>
    %cst_22 = arith.constant dense<0.000000e+00> : vector<84x7xf32>
    %24 = tpu.matmul %21, %19, %cst_22 {dimension_numbers = #tpu.dot_dimension_numbers<[1], [0], [0], [1], [0, 0, 1, 1], [], []>} : vector<84x84xf32>, vector<84x7xf32>, vector<84x7xf32> -> vector<84x7xf32>
    %25 = arith.addf %17, %24 : vector<84x7xf32>
    %26 = vector.broadcast %23 : vector<84x1xf32> to vector<84x7xf32>
    %27 = arith.addf %25, %26 : vector<84x7xf32>
    %c0_23 = arith.constant 0 : index
    %c0_24 = arith.constant 0 : index
    %28 = vector.load %arg2[%c0_23, %c0_24] : memref<84x7xf32, #tpu.memory_space<vmem>>, vector<84x7xf32>
    tpu.vector_store %arg2[%c0_23, %c0_24], %27 {strides = array<i32>} : memref<84x7xf32, #tpu.memory_space<vmem>>, vector<84x7xf32>,
    return
  }
}

</mosaic_0001>

<llo_original>
// kernel: forward.1
$region0: #{forward.1}
  #allocation0 [shape = 'u32[]', space=smem, size = 0x4, offset = 0x4, fixed_abs, tag = 'smem constant byte address 0x4 - core index']
  #allocation1 [shape = 'u32[72,128]{1,0:T(1,128)}', space=vmem, size = 0x9000, scoped, tag = 'internal scratch']
  %s0 = inlined_call_operand.vmem [shape: f32[30,12], index: 0, kind: input, shape index: {}]
  %s1 = inlined_call_operand.hbm [shape: f32[3,112,96], index: 1, kind: input, shape index: {}]
  %s2 = inlined_call_operand.vmem [shape: f32[84,7], index: 2, kind: output, shape index: {}]
  %s3 = sld [smem:[#allocation0]]
  $region22: #{forward.1} parent=0
    _
  %s5 = ssub.s32 1, %s3
  %s6 = scalar_select 0, %s5, %s3
  $region1: #{forward.1} parent=0
    #allocation2 [shape = 'u8[172032]{0}', space=vmem, size = 0x2a000, scoped, tag = 'input window, operand 1, single buffered']
    #allocation3 [shape = 's32[1]{0}', space=sflag, size = 0x4, scoped, tag = 'scoped memory for forward.1']
    %7 = vsyncpa [#allocation3], 0
    // Predicated region
    $region2: #{forward.1} parent=1 // pred_check
      _
    $region3: #{forward.1} parent=1 // pred_check_branch
      %9 = sbr.rel (0) target = $region5
    $region4: #{forward.1} parent=1 // pred_region
      _
    $region5: #{forward.1} parent=1 // pred_fallthru
      _
    // Predicated region
    $region6: #{forward.1} parent=1 // pred_check
      _
    $region7: #{forward.1} parent=1 // pred_check_branch
      %11 = sbr.rel (0) target = $region9
    $region8: #{forward.1} parent=1 // pred_region
      %13 = vsyncadd [#allocation3], 0
      %s14 = sshll.u32 %s1, 4
      %s15 = int_to_ptr.hbm [resolvable:$true] %s14
      %s16 = sshll.u32 [#allocation2], 4
      %s17 = int_to_ptr.vmem [resolvable:$true] %s16
      %22 = dma.hbm_to_vmem [thread:$0]  %s15, 5376, %s17, [#allocation3], 128, 128, 8
    $region9: #{forward.1} parent=1 // pred_fallthru
      _
    // Predicated region
    $region10: #{forward.1} parent=1 // pred_check
      _
    $region11: #{forward.1} parent=1 // pred_check_branch
      %24 = sbr.rel (0) target = $region13
    $region12: #{forward.1} parent=1 // pred_region
      %26 = dma.done [#allocation3], 5376
    $region13: #{forward.1} parent=1 // pred_fallthru
      _
    %v27 = vld [vmem:[%s0] sm:$0xff]
    %v28 = vld [vmem:[%s0 + $0x8] sm:$0xff]
    %v29 = vld [vmem:[%s0 + $0x10] sm:$0xff]
    %v30 = vld [vmem:[%s0 + $0x18] sm:$0x3f]
    %v31 = vld [vmem:[#allocation2 + $0x60] sm:$0xff]
    %v32 = vld [vmem:[#allocation2 + $0x68] sm:$0xf]
    %s33 = scalar_lea.vmem [#allocation2], 112
    %v34 = vld [vmem:[%s33 + $0x60] sm:$0xff]
    %v35 = vld [vmem:[%s33 + $0x68] sm:$0xf]
    %vm36 = vcmask 97280
    %v38 = vsel %vm36, %v27, 0
    %v41 = vsel %vm36, %v28, 0
    %v44 = vsel %vm36, %v29, 0
    %v47 = vsel %vm36, %v30, 0
    %vm49 = vcmask 1043456
    %v51 = vsel %vm49, %v32, 0
    %53 = vmatpush.msra.mxu0 0.0
    %54 = vmatpush.msra.mxu0 0.0
    %55 = vmatpush.msra.mxu0 0.0
    %56 = vmatpush.msra.mxu0 0.0
    %57 = vmatpush.msra.mxu0 0.0
    %58 = vmatpush.msra.mxu0 0.0
    %59 = vmatpush.msra.mxu0 0.0
    %60 = vmatpush.msra.mxu0 0.0
    %61 = vmatpush.msra.mxu0 0.0
    %62 = vmatpush.msra.mxu0 0.0
    %63 = vmatpush.msra.mxu0 0.0
    %64 = vmatpush.msra.mxu0 0.0
    %65 = vmatpush.msra.mxu0 0.0
    %66 = vmatpush.msra.mxu0 0.0
    %67 = vmatpush.msra.mxu0 %v51
    %68 = vmatpush.msra.mxu0 %v31
    %69 = vmatmul.f32.gmra.mxu0 %v38
    %v70 = vpop.f32.mrf.mxu0
    %v71 = vadd.f32 0.0, %v70
    %72 = vmatmul.f32.gmra.mxu0 %v41
    %v73 = vpop.f32.mrf.mxu0
    %v74 = vadd.f32 0.0, %v73
    %75 = vmatmul.f32.gmra.mxu0 %v44
    %v76 = vpop.f32.mrf.mxu0
    %v77 = vadd.f32 0.0, %v76
    %78 = vmatmul.f32.gmra.mxu0 %v47
    %v79 = vpop.f32.mrf.mxu0
    %v80 = vadd.f32 0.0, %v79
    %81 = vdwg.mxu0
    %v83 = vsel %vm49, %v35, 0
    %85 = vmatpush.msra.mxu0 0.0
    %86 = vmatpush.msra.mxu0 0.0
    %87 = vmatpush.msra.mxu0 0.0
    %88 = vmatpush.msra.mxu0 0.0
    %89 = vmatpush.msra.mxu0 0.0
    %90 = vmatpush.msra.mxu0 0.0
    %91 = vmatpush.msra.mxu0 0.0
    %92 = vmatpush.msra.mxu0 0.0
    %93 = vmatpush.msra.mxu0 0.0
    %94 = vmatpush.msra.mxu0 0.0
    %95 = vmatpush.msra.mxu0 0.0
    %96 = vmatpush.msra.mxu0 0.0
    %97 = vmatpush.msra.mxu0 0.0
    %98 = vmatpush.msra.mxu0 0.0
    %99 = vmatpush.msra.mxu0 %v83
    %100 = vmatpush.msra.mxu0 %v34
    %101 = vmatmul.f32.gmra.mxu0 %v38
    %v102 = vpop.f32.mrf.mxu0
    %v103 = vadd.f32 0.0, %v102
    %104 = vmatmul.f32.gmra.mxu0 %v41
    %v105 = vpop.f32.mrf.mxu0
    %v106 = vadd.f32 0.0, %v105
    %107 = vmatmul.f32.gmra.mxu0 %v44
    %v108 = vpop.f32.mrf.mxu0
    %v109 = vadd.f32 0.0, %v108
    %110 = vmatmul.f32.gmra.mxu0 %v47
    %v111 = vpop.f32.mrf.mxu0
    %v112 = vadd.f32 0.0, %v111
    %113 = vdwg.mxu0
    %v114 = vld [vmem:[#allocation2] sm:$0xff]
    %v115 = vld [vmem:[#allocation2 + $0x8] sm:$0xff]
    %v116 = vld [vmem:[#allocation2 + $0x10] sm:$0xff]
    %v117 = vld [vmem:[#allocation2 + $0x18] sm:$0xff]
    %v118 = vld [vmem:[#allocation2 + $0x20] sm:$0xff]
    %v119 = vld [vmem:[#allocation2 + $0x28] sm:$0xff]
    %v120 = vld [vmem:[#allocation2 + $0x30] sm:$0xff]
    %v121 = vld [vmem:[#allocation2 + $0x38] sm:$0xff]
    %v122 = vld [vmem:[#allocation2 + $0x40] sm:$0xff]
    %v123 = vld [vmem:[#allocation2 + $0x48] sm:$0xff]
    %v124 = vld [vmem:[#allocation2 + $0x50] sm:$0xf]
    %v125 = vld [vmem:[%s33] sm:$0xff]
    %v126 = vld [vmem:[%s33 + $0x8] sm:$0xff]
    %v127 = vld [vmem:[%s33 + $0x10] sm:$0xff]
    %v128 = vld [vmem:[%s33 + $0x18] sm:$0xff]
    %v129 = vld [vmem:[%s33 + $0x20] sm:$0xff]
    %v130 = vld [vmem:[%s33 + $0x28] sm:$0xff]
    %v131 = vld [vmem:[%s33 + $0x30] sm:$0xff]
    %v132 = vld [vmem:[%s33 + $0x38] sm:$0xff]
    %v133 = vld [vmem:[%s33 + $0x40] sm:$0xff]
    %v134 = vld [vmem:[%s33 + $0x48] sm:$0xff]
    %v135 = vld [vmem:[%s33 + $0x50] sm:$0xf]
    %vm136 = vcmask 244736
    %v138 = vsel %vm136, %v125, 0
    %v141 = vsel %vm136, %v126, 0
    %v144 = vsel %vm136, %v127, 0
    %v147 = vsel %vm136, %v128, 0
    %v150 = vsel %vm136, %v129, 0
    %v153 = vsel %vm136, %v130, 0
    %v156 = vsel %vm136, %v131, 0
    %v159 = vsel %vm136, %v132, 0
    %v162 = vsel %vm136, %v133, 0
    %v165 = vsel %vm136, %v134, 0
    %v168 = vsel %vm136, %v135, 0
    %vm170 = vcmask 1045504
    %v172 = vsel %vm170, %v112, 0
    %174 = vmatpush.msra.mxu0 0.0
    %175 = vmatpush.msra.mxu0 0.0
    %176 = vmatpush.msra.mxu0 0.0
    %177 = vmatpush.msra.mxu0 0.0
    %178 = vmatpush.msra.mxu0 0.0
    %179 = vmatpush.msra.mxu0 0.0
    %180 = vmatpush.msra.mxu0 0.0
    %181 = vmatpush.msra.mxu0 0.0
    %182 = vmatpush.msra.mxu0 0.0
    %183 = vmatpush.msra.mxu0 0.0
    %184 = vmatpush.msra.mxu0 0.0
    %185 = vmatpush.msra.mxu0 0.0
    %186 = vmatpush.msra.mxu0 %v172
    %187 = vmatpush.msra.mxu0 %v109
    %188 = vmatpush.msra.mxu0 %v106
    %189 = vmatpush.msra.mxu0 %v103
    %190 = vmatmul.f32.gmra.mxu0 %v138
    %v191 = vpop.f32.mrf.mxu0
    %v192 = vadd.f32 0.0, %v191
    %193 = vmatmul.f32.gmra.mxu0 %v141
    %v194 = vpop.f32.mrf.mxu0
    %v195 = vadd.f32 0.0, %v194
    %196 = vmatmul.f32.gmra.mxu0 %v144
    %v197 = vpop.f32.mrf.mxu0
    %v198 = vadd.f32 0.0, %v197
    %199 = vmatmul.f32.gmra.mxu0 %v147
    %v200 = vpop.f32.mrf.mxu0
    %v201 = vadd.f32 0.0, %v200
    %202 = vmatmul.f32.gmra.mxu0 %v150
    %v203 = vpop.f32.mrf.mxu0
    %v204 = vadd.f32 0.0, %v203
    %205 = vmatmul.f32.gmra.mxu0 %v153
    %v206 = vpop.f32.mrf.mxu0
    %v207 = vadd.f32 0.0, %v206
    %208 = vmatmul.f32.gmra.mxu0 %v156
    %v209 = vpop.f32.mrf.mxu0
    %v210 = vadd.f32 0.0, %v209
    %211 = vmatmul.f32.gmra.mxu0 %v159
    %v212 = vpop.f32.mrf.mxu0
    %v213 = vadd.f32 0.0, %v212
    %214 = vmatmul.f32.gmra.mxu0 %v162
    %v215 = vpop.f32.mrf.mxu0
    %v216 = vadd.f32 0.0, %v215
    %217 = vmatmul.f32.gmra.mxu0 %v165
    %v218 = vpop.f32.mrf.mxu0
    %v219 = vadd.f32 0.0, %v218
    %220 = vmatmul.f32.gmra.mxu0 %v168
    %v221 = vpop.f32.mrf.mxu0
    %v222 = vadd.f32 0.0, %v221
    %223 = vdwg.mxu0
    %v225 = vsel %vm136, %v114, 0
    %v228 = vsel %vm136, %v115, 0
    %v231 = vsel %vm136, %v116, 0
    %v234 = vsel %vm136, %v117, 0
    %v237 = vsel %vm136, %v118, 0
    %v240 = vsel %vm136, %v119, 0
    %v243 = vsel %vm136, %v120, 0
    %v246 = vsel %vm136, %v121, 0
    %v249 = vsel %vm136, %v122, 0
    %v252 = vsel %vm136, %v123, 0
    %v255 = vsel %vm136, %v124, 0
    %v258 = vsel %vm170, %v80, 0
    %260 = vmatpush.msra.mxu0 0.0
    %261 = vmatpush.msra.mxu0 0.0
    %262 = vmatpush.msra.mxu0 0.0
    %263 = vmatpush.msra.mxu0 0.0
    %264 = vmatpush.msra.mxu0 0.0
    %265 = vmatpush.msra.mxu0 0.0
    %266 = vmatpush.msra.mxu0 0.0
    %267 = vmatpush.msra.mxu0 0.0
    %268 = vmatpush.msra.mxu0 0.0
    %269 = vmatpush.msra.mxu0 0.0
    %270 = vmatpush.msra.mxu0 0.0
    %271 = vmatpush.msra.mxu0 0.0
    %272 = vmatpush.msra.mxu0 %v258
    %273 = vmatpush.msra.mxu0 %v77
    %274 = vmatpush.msra.mxu0 %v74
    %275 = vmatpush.msra.mxu0 %v71
    %276 = vmatmul.f32.gmra.mxu0 %v225
    %v277 = vpop.f32.mrf.mxu0
    %v278 = vadd.f32 %v192, %v277
    %279 = vmatmul.f32.gmra.mxu0 %v228
    %v280 = vpop.f32.mrf.mxu0
    %v281 = vadd.f32 %v195, %v280
    %282 = vmatmul.f32.gmra.mxu0 %v231
    %v283 = vpop.f32.mrf.mxu0
    %v284 = vadd.f32 %v198, %v283
    %285 = vmatmul.f32.gmra.mxu0 %v234
    %v286 = vpop.f32.mrf.mxu0
    %v287 = vadd.f32 %v201, %v286
    %288 = vmatmul.f32.gmra.mxu0 %v237
    %v289 = vpop.f32.mrf.mxu0
    %v290 = vadd.f32 %v204, %v289
    %291 = vmatmul.f32.gmra.mxu0 %v240
    %v292 = vpop.f32.mrf.mxu0
    %v293 = vadd.f32 %v207, %v292
    %294 = vmatmul.f32.gmra.mxu0 %v243
    %v295 = vpop.f32.mrf.mxu0
    %v296 = vadd.f32 %v210, %v295
    %297 = vmatmul.f32.gmra.mxu0 %v246
    %v298 = vpop.f32.mrf.mxu0
    %v299 = vadd.f32 %v213, %v298
    %300 = vmatmul.f32.gmra.mxu0 %v249
    %v301 = vpop.f32.mrf.mxu0
    %v302 = vadd.f32 %v216, %v301
    %303 = vmatmul.f32.gmra.mxu0 %v252
    %v304 = vpop.f32.mrf.mxu0
    %v305 = vadd.f32 %v219, %v304
    %306 = vmatmul.f32.gmra.mxu0 %v255
    %v307 = vpop.f32.mrf.mxu0
    %v308 = vadd.f32 %v222, %v307
    %309 = vdwg.mxu0
    %310 = vset.pattern.permute.xlu0 88
    %311 = vperm.xlu0 %310, %v114
    %v312 = vpop.permute.xlu0 %311
    %314 = vset.pattern.permute.xlu0 88
    %315 = vperm.xlu0 %314, %v115
    %v316 = vpop.permute.xlu0 %315
    %318 = vset.pattern.permute.xlu0 88
    %319 = vperm.xlu0 %318, %v116
    %v320 = vpop.permute.xlu0 %319
    %322 = vset.pattern.permute.xlu0 88
    %323 = vperm.xlu0 %322, %v117
    %v324 = vpop.permute.xlu0 %323
    %326 = vset.pattern.permute.xlu0 88
    %327 = vperm.xlu0 %326, %v118
    %v328 = vpop.permute.xlu0 %327
    %330 = vset.pattern.permute.xlu0 88
    %331 = vperm.xlu0 %330, %v119
    %v332 = vpop.permute.xlu0 %331
    %334 = vset.pattern.permute.xlu0 88
    %335 = vperm.xlu0 %334, %v120
    %v336 = vpop.permute.xlu0 %335
    %338 = vset.pattern.permute.xlu0 88
    %339 = vperm.xlu0 %338, %v121
    %v340 = vpop.permute.xlu0 %339
    %342 = vset.pattern.permute.xlu0 88
    %343 = vperm.xlu0 %342, %v122
    %v344 = vpop.permute.xlu0 %343
    %346 = vset.pattern.permute.xlu0 88
    %347 = vperm.xlu0 %346, %v123
    %v348 = vpop.permute.xlu0 %347
    %350 = vset.pattern.permute.xlu0 88
    %351 = vperm.xlu0 %350, %v124
    %v352 = vpop.permute.xlu0 %351
    %v354 = vadd.f32 %v278, %v312
    %v355 = vadd.f32 %v281, %v316
    %v356 = vadd.f32 %v284, %v320
    %v357 = vadd.f32 %v287, %v324
    %v358 = vadd.f32 %v290, %v328
    %v359 = vadd.f32 %v293, %v332
    %v360 = vadd.f32 %v296, %v336
    %v361 = vadd.f32 %v299, %v340
    %v362 = vadd.f32 %v302, %v344
    %v363 = vadd.f32 %v305, %v348
    %v364 = vadd.f32 %v308, %v352
    %v365 = vmax.f32 %v354, 0.0
    %v366 = vmax.f32 %v355, 0.0
    %v367 = vmax.f32 %v356, 0.0
    %v368 = vmax.f32 %v357, 0.0
    %v369 = vmax.f32 %v358, 0.0
    %v370 = vmax.f32 %v359, 0.0
    %v371 = vmax.f32 %v360, 0.0
    %v372 = vmax.f32 %v361, 0.0
    %v373 = vmax.f32 %v362, 0.0
    %v374 = vmax.f32 %v363, 0.0
    %v375 = vmax.f32 %v364, 0.0
    %s376 = scalar_lea.vmem [#allocation2], 224
    %v377 = vld [vmem:[%s376] sm:$0xff]
    %v378 = vld [vmem:[%s376 + $0x8] sm:$0xff]
    %v379 = vld [vmem:[%s376 + $0x10] sm:$0xff]
    %v380 = vld [vmem:[%s376 + $0x18] sm:$0xff]
    %v381 = vld [vmem:[%s376 + $0x20] sm:$0xff]
    %v382 = vld [vmem:[%s376 + $0x28] sm:$0xff]
    %v383 = vld [vmem:[%s376 + $0x30] sm:$0xff]
    %v384 = vld [vmem:[%s376 + $0x38] sm:$0xff]
    %v385 = vld [vmem:[%s376 + $0x40] sm:$0xff]
    %v386 = vld [vmem:[%s376 + $0x48] sm:$0xff]
    %v387 = vld [vmem:[%s376 + $0x50] sm:$0xf]
    %vm388 = vcmask 687104
    %v390 = vsel %vm388, %v377, 0
    %v393 = vsel %vm388, %v378, 0
    %v396 = vsel %vm388, %v379, 0
    %v399 = vsel %vm388, %v380, 0
    %v402 = vsel %vm388, %v381, 0
    %v405 = vsel %vm388, %v382, 0
    %v408 = vsel %vm388, %v383, 0
    %v411 = vsel %vm388, %v384, 0
    %v414 = vsel %vm388, %v385, 0
    %v417 = vsel %vm388, %v386, 0
    %v420 = vsel %vm388, %v387, 0
    %v423 = vsel %vm49, %v375, 0
    %425 = vmatpush.msra.mxu0 0.0
    %426 = vmatpush.msra.mxu0 0.0
    %427 = vmatpush.msra.mxu0 0.0
    %428 = vmatpush.msra.mxu0 0.0
    %429 = vmatpush.msra.mxu0 0.0
    %430 = vmatpush.msra.mxu0 %v423
    %431 = vmatpush.msra.mxu0 %v374
    %432 = vmatpush.msra.mxu0 %v373
    %433 = vmatpush.msra.mxu0 %v372
    %434 = vmatpush.msra.mxu0 %v371
    %435 = vmatpush.msra.mxu0 %v370
    %436 = vmatpush.msra.mxu0 %v369
    %437 = vmatpush.msra.mxu0 %v368
    %438 = vmatpush.msra.mxu0 %v367
    %439 = vmatpush.msra.mxu0 %v366
    %440 = vmatpush.msra.mxu0 %v365
    %441 = vmatmul.f32.gmra.mxu0 %v390
    %v442 = vpop.f32.mrf.mxu0
    %v443 = vadd.f32 0.0, %v442
    %444 = vmatmul.f32.gmra.mxu0 %v393
    %v445 = vpop.f32.mrf.mxu0
    %v446 = vadd.f32 0.0, %v445
    %447 = vmatmul.f32.gmra.mxu0 %v396
    %v448 = vpop.f32.mrf.mxu0
    %v449 = vadd.f32 0.0, %v448
    %450 = vmatmul.f32.gmra.mxu0 %v399
    %v451 = vpop.f32.mrf.mxu0
    %v452 = vadd.f32 0.0, %v451
    %453 = vmatmul.f32.gmra.mxu0 %v402
    %v454 = vpop.f32.mrf.mxu0
    %v455 = vadd.f32 0.0, %v454
    %456 = vmatmul.f32.gmra.mxu0 %v405
    %v457 = vpop.f32.mrf.mxu0
    %v458 = vadd.f32 0.0, %v457
    %459 = vmatmul.f32.gmra.mxu0 %v408
    %v460 = vpop.f32.mrf.mxu0
    %v461 = vadd.f32 0.0, %v460
    %462 = vmatmul.f32.gmra.mxu0 %v411
    %v463 = vpop.f32.mrf.mxu0
    %v464 = vadd.f32 0.0, %v463
    %465 = vmatmul.f32.gmra.mxu0 %v414
    %v466 = vpop.f32.mrf.mxu0
    %v467 = vadd.f32 0.0, %v466
    %468 = vmatmul.f32.gmra.mxu0 %v417
    %v469 = vpop.f32.mrf.mxu0
    %v470 = vadd.f32 0.0, %v469
    %471 = vmatmul.f32.gmra.mxu0 %v420
    %v472 = vpop.f32.mrf.mxu0
    %v473 = vadd.f32 0.0, %v472
    %474 = vdwg.mxu0
    %v475 = vadd.f32 %v354, %v443
    %v476 = vadd.f32 %v355, %v446
    %v477 = vadd.f32 %v356, %v449
    %v478 = vadd.f32 %v357, %v452
    %v479 = vadd.f32 %v358, %v455
    %v480 = vadd.f32 %v359, %v458
    %v481 = vadd.f32 %v360, %v461
    %v482 = vadd.f32 %v361, %v464
    %v483 = vadd.f32 %v362, %v467
    %v484 = vadd.f32 %v363, %v470
    %v485 = vadd.f32 %v364, %v473
    %486 = vset.pattern.permute.xlu0 88
    %487 = vperm.xlu0 %486, %v377
    %v488 = vpop.permute.xlu0 %487
    %490 = vset.pattern.permute.xlu0 88
    %491 = vperm.xlu0 %490, %v378
    %v492 = vpop.permute.xlu0 %491
    %494 = vset.pattern.permute.xlu0 88
    %495 = vperm.xlu0 %494, %v379
    %v496 = vpop.permute.xlu0 %495
    %498 = vset.pattern.permute.xlu0 88
    %499 = vperm.xlu0 %498, %v380
    %v500 = vpop.permute.xlu0 %499
    %502 = vset.pattern.permute.xlu0 88
    %503 = vperm.xlu0 %502, %v381
    %v504 = vpop.permute.xlu0 %503
    %506 = vset.pattern.permute.xlu0 88
    %507 = vperm.xlu0 %506, %v382
    %v508 = vpop.permute.xlu0 %507
    %510 = vset.pattern.permute.xlu0 88
    %511 = vperm.xlu0 %510, %v383
    %v512 = vpop.permute.xlu0 %511
    %514 = vset.pattern.permute.xlu0 88
    %515 = vperm.xlu0 %514, %v384
    %v516 = vpop.permute.xlu0 %515
    %518 = vset.pattern.permute.xlu0 88
    %519 = vperm.xlu0 %518, %v385
    %v520 = vpop.permute.xlu0 %519
    %522 = vset.pattern.permute.xlu0 88
    %523 = vperm.xlu0 %522, %v386
    %v524 = vpop.permute.xlu0 %523
    %526 = vset.pattern.permute.xlu0 88
    %527 = vperm.xlu0 %526, %v387
    %v528 = vpop.permute.xlu0 %527
    %v530 = vadd.f32 %v475, %v488
    %v531 = vadd.f32 %v476, %v492
    %v532 = vadd.f32 %v477, %v496
    %v533 = vadd.f32 %v478, %v500
    %v534 = vadd.f32 %v479, %v504
    %v535 = vadd.f32 %v480, %v508
    %v536 = vadd.f32 %v481, %v512
    %v537 = vadd.f32 %v482, %v516
    %v538 = vadd.f32 %v483, %v520
    %v539 = vadd.f32 %v484, %v524
    %v540 = vadd.f32 %v485, %v528
    %vm541 = vcmask 56320
    %542 = vst.msk [vmem:[%s2] sm:$0xff] %vm541, %v530
    %543 = vst.msk [vmem:[%s2 + $0x8] sm:$0xff] %vm541, %v531
    %544 = vst.msk [vmem:[%s2 + $0x10] sm:$0xff] %vm541, %v532
    %545 = vst.msk [vmem:[%s2 + $0x18] sm:$0xff] %vm541, %v533
    %546 = vst.msk [vmem:[%s2 + $0x20] sm:$0xff] %vm541, %v534
    %547 = vst.msk [vmem:[%s2 + $0x28] sm:$0xff] %vm541, %v535
    %548 = vst.msk [vmem:[%s2 + $0x30] sm:$0xff] %vm541, %v536
    %549 = vst.msk [vmem:[%s2 + $0x38] sm:$0xff] %vm541, %v537
    %550 = vst.msk [vmem:[%s2 + $0x40] sm:$0xff] %vm541, %v538
    %551 = vst.msk [vmem:[%s2 + $0x48] sm:$0xff] %vm541, %v539
    %vm552 = vcmask 52224
    %553 = vst.msk [vmem:[%s2 + $0x50] sm:$0xf] %vm552, %v540
    // Predicated region
    $region14: #{forward.1} parent=1 // pred_check
      _
    $region15: #{forward.1} parent=1 // pred_check_branch
      %555 = sbr.rel (0) target = $region17
    $region16: #{forward.1} parent=1 // pred_region
      _
    $region17: #{forward.1} parent=1 // pred_fallthru
      _
    // Predicated region
    $region18: #{forward.1} parent=1 // pred_check
      _
    $region19: #{forward.1} parent=1 // pred_check_branch
      %557 = sbr.rel (0) target = $region21
    $region20: #{forward.1} parent=1 // pred_region
      _
    $region21: #{forward.1} parent=1 // pred_fallthru
      _
    %558 = vsyncpa [#allocation3], 1

</llo_original>
